<compile_context>
chip_gen: v7x
topology: tpu7x:2x2x1
jax: 0.10.0
libtpu: 0.0.40
codegen_flags: <defaults>
</compile_context>

<pallas_src>
import functools
import math

import jax
import jax.numpy as jnp
from jax.experimental import pallas as pl
from jax.experimental.pallas import tpu as pltpu


# --------------------------- sizing helpers ----------------------------------
def _round_up(n, m):
    return ((n + m - 1) // m) * m


def _vmem_capacity_bytes():
    cap = 128 * 1024 * 1024
    try:
        cap = int(pltpu.get_tpu_info().vmem_capacity_bytes)
    except Exception:
        pass
    return cap


def _vmem_budget_bytes():
    """Usable per-generation VMEM budget (headroom for Mosaic internals)."""
    return min(_vmem_capacity_bytes() * 3 // 4, 100 * 1024 * 1024)


def _tile_bytes(tile_t, tile_i, D, x_bytes=2, out_bytes=4):
    """Working-set estimate for one grid step (double-buffered pipelining)."""
    return (
        2 * tile_t * D * x_bytes           # x tile (bf16), double-buffered
        + 2 * D * (2 * tile_i) * 2         # fused [w1|w3] tile (bf16), d-buf
        + 2 * tile_i * D * 2               # w2.T tile (bf16), double-buffered
        + 2 * tile_t * D * out_bytes       # output tile, double-buffered
        + tile_t * D * 4                   # f32 accumulator scratch
        + 2 * tile_t * (2 * tile_i) * 4    # gate/up f32 intermediates
        + 2 * 1024 * 1024                  # Mosaic internal scratch margin
    )


def _select_tile_t(T, tile_i, D, budget, out_bytes):
    if T <= 256:
        # Single token tile (decode / small batch); pad to sublane multiple.
        return _round_up(max(T, 8), 8)
    cap = _round_up(T, 256)
    cands = [c for c in (1024, 768, 512, 256) if c <= cap] or [256]
    for tt in cands:
        if _tile_bytes(tt, tile_i, D, out_bytes=out_bytes) <= budget:
            return tt
    return cands[-1]


# --------------------------- weight packing ----------------------------------
def prepare_feed_forward_weights(w1, w3, w2):
    """Pack weights ONCE at parameter-prep time (not in the per-call path).

    w1, w3: (I, D); w2: (D, I)   (torch nn.Linear out,in layout).
    Returns (w13, w2t, tile_i):
      w13: (D, 2*I_pad) bf16, columns per I-tile ordered [w1_tile | w3_tile]
      w2t: (I_pad, D)   bf16
    """
    I, D = w1.shape
    I_pad = _round_up(I, 128)
    budget = _vmem_budget_bytes()

    tile_i = 128
    for cand in (512, 256, 128):
        if I_pad % cand == 0 and _tile_bytes(256, cand, D) <= budget:
            tile_i = cand
            break

    if I_pad != I:
        pad = I_pad - I
        w1 = jnp.pad(w1, ((0, pad), (0, 0)))
        w3 = jnp.pad(w3, ((0, pad), (0, 0)))
        w2 = jnp.pad(w2, ((0, 0), (0, pad)))

    n_i = I_pad // tile_i
    w1b = w1.T.reshape(D, n_i, tile_i)
    w3b = w3.T.reshape(D, n_i, tile_i)
    w13 = jnp.concatenate([w1b, w3b], axis=-1).reshape(D, 2 * I_pad)
    return w13.astype(jnp.bfloat16), w2.T.astype(jnp.bfloat16), tile_i


# ------------------------------- kernel ---------------------------------------
def _ffn_kernel(x_ref, w13_ref, w2_ref, o_ref, acc_ref, *, tile_i):
    j = pl.program_id(1)
    last = pl.num_programs(1) - 1

    @pl.when(j == 0)
    def _():
        acc_ref[...] = jnp.zeros_like(acc_ref)

    # Single fused gate/up matmul: (TT, D) @ (D, 2*TI) -> (TT, 2*TI), f32 acc.
    gu = jnp.dot(x_ref[...], w13_ref[...], preferred_element_type=jnp.float32)
    g = gu[:, :tile_i]                       # x @ w1.T  (this I tile)
    u = gu[:, tile_i:]                       # x @ w3.T  (this I tile)

    # SiLU gate in f32 (VPU + EUP), down-project this I tile.
    a = (g * jax.nn.sigmoid(g)) * u
    partial = jnp.dot(a.astype(jnp.bfloat16), w2_ref[...],
                      preferred_element_type=jnp.float32)

    @pl.when(j < last)
    def _():
        acc_ref[...] = acc_ref[...] + partial

    # Fused final store: no accumulator write-back on the last reduction step.
    @pl.when(j == last)
    def _():
        o_ref[...] = (acc_ref[...] + partial).astype(o_ref.dtype)


# ------------------------------ wrappers --------------------------------------
def feed_forward_packed(x, w13, w2t, *, tile_i):
    """out = w2( silu(w1 x) * (w3 x) ) using pre-packed bf16 weight slabs."""
    orig_shape = x.shape
    out_dtype = x.dtype
    D = orig_shape[-1]
    I_pad = w2t.shape[0]
    n_i = I_pad // tile_i

    xf = x.reshape(-1, D).astype(jnp.bfloat16)     # bf16 DMA / MXU operand
    T = xf.shape[0]

    budget = _vmem_budget_bytes()
    out_bytes = jnp.dtype(out_dtype).itemsize
    tile_t = _select_tile_t(T, tile_i, D, budget, out_bytes)
    T_pad = _round_up(T, tile_t)
    if T_pad != T:
        xf = jnp.pad(xf, ((0, T_pad - T), (0, 0)))
    n_t = T_pad // tile_t

    bytes_needed = _tile_bytes(tile_t, tile_i, D, out_bytes=out_bytes)
    vmem_limit = min(max(bytes_needed, 32 * 1024 * 1024),
                     _vmem_capacity_bytes() * 7 // 8)

    out = pl.pallas_call(
        functools.partial(_ffn_kernel, tile_i=tile_i),
        out_shape=jax.ShapeDtypeStruct((T_pad, D), out_dtype),
        grid_spec=pltpu.PrefetchScalarGridSpec(
            num_scalar_prefetch=0,
            grid=(n_t, n_i),
            in_specs=[
                pl.BlockSpec((tile_t, D), lambda i, j: (i, 0)),       # x
                pl.BlockSpec((D, 2 * tile_i), lambda i, j: (0, j)),   # [w1|w3]
                pl.BlockSpec((tile_i, D), lambda i, j: (j, 0)),       # w2.T
            ],
            out_specs=pl.BlockSpec((tile_t, D), lambda i, j: (i, 0)),
            scratch_shapes=[pltpu.VMEM((tile_t, D), jnp.float32)],
        ),
        compiler_params=pltpu.CompilerParams(
            dimension_semantics=("parallel", "arbitrary"),
            vmem_limit_bytes=int(vmem_limit)),
    )(xf, w13, w2t)

    if T_pad != T:
        out = out[:T]
    return out.reshape(orig_shape)


def feed_forward(x, w1, w3, w2):
    """Convenience wrapper; prefer caching prepare_feed_forward_weights()."""
    w13, w2t, tile_i = prepare_feed_forward_weights(w1, w3, w2)
    return feed_forward_packed(x, w13, w2t, tile_i=tile_i)


# ---------------- pure-JAX reference (mirrors the PyTorch forward, f32) -------
def _ref_feed_forward(x, w1, w3, w2):
    g = x @ w1.T
    u = x @ w3.T
    return (g * jax.nn.sigmoid(g) * u) @ w2.T


if __name__ == "__main__":
    # FeedForward.__init__ hidden-dim rounding (llama convention).
    dim = 256
    multiple_of = 128
    ffn_dim_multiplier = None
    hidden_dim = 4 * dim
    hidden_dim = int(2 * hidden_dim / 3)
    if ffn_dim_multiplier is not None:
        hidden_dim = int(ffn_dim_multiplier * hidden_dim)
    hidden_dim = multiple_of * ((hidden_dim + multiple_of - 1) // multiple_of)  # 768

    B, S = 2, 8
    key = jax.random.PRNGKey(0)
    kx, k1, k2, k3 = jax.random.split(key, 4)
    x = jax.random.normal(kx, (B, S, dim), jnp.float32)

    b1 = 1.0 / math.sqrt(dim)
    b2 = 1.0 / math.sqrt(hidden_dim)
    w1 = jax.random.uniform(k1, (hidden_dim, dim), jnp.float32, -b1, b1)
    w3 = jax.random.uniform(k2, (hidden_dim, dim), jnp.float32, -b1, b1)
    w2 = jax.random.uniform(k3, (dim, hidden_dim), jnp.float32, -b2, b2)

    # Pack weights once (parameter-prep time); jit only the packed forward.
    w13, w2t, tile_i = prepare_feed_forward_weights(w1, w3, w2)
    w13 = jax.block_until_ready(w13)
    w2t = jax.block_until_ready(w2t)

    fwd = jax.jit(functools.partial(feed_forward_packed, tile_i=tile_i))
    out = jax.block_until_ready(fwd(x, w13, w2t))

    ref = _ref_feed_forward(x, w1, w3, w2)
    assert out.shape == x.shape and out.dtype == x.dtype
    err = float(jnp.max(jnp.abs(out - ref)))
    scale = float(jnp.max(jnp.abs(ref)))
    # bf16 matmul operands with f32 accumulation: ~1% worst-case relative error.
    assert err <= 3e-2 * scale + 1e-5, (err, scale)

    print("KERNEL_OK")
</pallas_src>

<mosaic_0001>
module attributes {stable_mosaic.version = 11 : i64} {
  func.func @_ffn_kernel(%arg0: i32, %arg1: i32, %arg2: memref<16x256xbf16, #tpu.memory_space<vmem>>, %arg3: memref<256x512xbf16, #tpu.memory_space<vmem>>, %arg4: memref<256x256xbf16, #tpu.memory_space<vmem>>, %arg5: memref<16x256xf32, #tpu.memory_space<vmem>>, %arg6: memref<16x256xf32, #tpu.memory_space<vmem>>) attributes {dimension_semantics = [#tpu.dimension_semantics<parallel>, #tpu.dimension_semantics<arbitrary>], iteration_bounds = array<i64: 1, 3>, scalar_prefetch = 0 : i64, scratch_operands = 1 : i64, tpu.core_type = #tpu.core_type<tc>, window_params = [{transform_indices = @transform_0, window_bounds = array<i64: 16, 256>}, {transform_indices = @transform_1, window_bounds = array<i64: 256, 512>}, {transform_indices = @transform_2, window_bounds = array<i64: 256, 256>}, {transform_indices = @transform_3, window_bounds = array<i64: 16, 256>}]} {
    %c0_i32 = arith.constant 0 : i32
    %0 = arith.cmpi eq, %arg1, %c0_i32 : i32
    %1 = arith.extui %0 : i1 to i32
    %c0_i32_0 = arith.constant 0 : i32
    %2 = arith.cmpi ne, %1, %c0_i32_0 : i32
    scf.if %2 {
      %cst_11 = arith.constant 0.000000e+00 : f32
      %24 = vector.broadcast %cst_11 : f32 to vector<16x256xf32>
      %c0_12 = arith.constant 0 : index
      %c0_13 = arith.constant 0 : index
      %25 = vector.load %arg6[%c0_12, %c0_13] : memref<16x256xf32, #tpu.memory_space<vmem>>, vector<16x256xf32>
      tpu.vector_store %arg6[%c0_12, %c0_13], %24 {strides = array<i32>} : memref<16x256xf32, #tpu.memory_space<vmem>>, vector<16x256xf32>,
    } else {
    }
    %c0 = arith.constant 0 : index
    %c0_1 = arith.constant 0 : index
    %3 = vector.load %arg2[%c0, %c0_1] : memref<16x256xbf16, #tpu.memory_space<vmem>>, vector<16x256xbf16>
    %c0_2 = arith.constant 0 : index
    %c0_3 = arith.constant 0 : index
    %4 = vector.load %arg3[%c0_2, %c0_3] : memref<256x512xbf16, #tpu.memory_space<vmem>>, vector<256x512xbf16>
    %cst = arith.constant dense<0.000000e+00> : vector<16x512xf32>
    %5 = tpu.matmul %3, %4, %cst {dimension_numbers = #tpu.dot_dimension_numbers<[1], [0], [0], [1], [0, 0, 1, 1], [], []>} : vector<16x256xbf16>, vector<256x512xbf16>, vector<16x512xf32> -> vector<16x512xf32>
    %6 = vector.extract_strided_slice %5 {offsets = [0, 0], sizes = [16, 256], strides = [1, 1]} : vector<16x512xf32> to vector<16x256xf32>
    %7 = vector.extract_strided_slice %5 {offsets = [0, 256], sizes = [16, 256], strides = [1, 1]} : vector<16x512xf32> to vector<16x256xf32>
    %8 = arith.negf %6 : vector<16x256xf32>
    %9 = math.exp %8 : vector<16x256xf32>
    %cst_4 = arith.constant 1.000000e+00 : f32
    %10 = vector.broadcast %cst_4 : f32 to vector<16x256xf32>
    %11 = arith.addf %10, %9 : vector<16x256xf32>
    %12 = arith.divf %10, %11 : vector<16x256xf32>
    %13 = arith.mulf %6, %12 : vector<16x256xf32>
    %14 = arith.mulf %13, %7 : vector<16x256xf32>
    %15 = arith.truncf %14 : vector<16x256xf32> to vector<16x256xbf16>
    %c0_5 = arith.constant 0 : index
    %c0_6 = arith.constant 0 : index
    %16 = vector.load %arg4[%c0_5, %c0_6] : memref<256x256xbf16, #tpu.memory_space<vmem>>, vector<256x256xbf16>
    %cst_7 = arith.constant dense<0.000000e+00> : vector<16x256xf32>
    %17 = tpu.matmul %15, %16, %cst_7 {dimension_numbers = #tpu.dot_dimension_numbers<[1], [0], [0], [1], [0, 0, 1, 1], [], []>} : vector<16x256xbf16>, vector<256x256xbf16>, vector<16x256xf32> -> vector<16x256xf32>
    %c2_i32 = arith.constant 2 : i32
    %18 = arith.cmpi slt, %arg1, %c2_i32 : i32
    %19 = arith.extui %18 : i1 to i32
    %c0_i32_8 = arith.constant 0 : i32
    %20 = arith.cmpi ne, %19, %c0_i32_8 : i32
    scf.if %20 {
      %c0_11 = arith.constant 0 : index
      %c0_12 = arith.constant 0 : index
      %24 = vector.load %arg6[%c0_11, %c0_12] : memref<16x256xf32, #tpu.memory_space<vmem>>, vector<16x256xf32>
      %25 = arith.addf %24, %17 : vector<16x256xf32>
      %c0_13 = arith.constant 0 : index
      %c0_14 = arith.constant 0 : index
      %26 = vector.load %arg6[%c0_13, %c0_14] : memref<16x256xf32, #tpu.memory_space<vmem>>, vector<16x256xf32>
      tpu.vector_store %arg6[%c0_13, %c0_14], %25 {strides = array<i32>} : memref<16x256xf32, #tpu.memory_space<vmem>>, vector<16x256xf32>,
    } else {
    }
    %c2_i32_9 = arith.constant 2 : i32
    %21 = arith.cmpi eq, %arg1, %c2_i32_9 : i32
    %22 = arith.extui %21 : i1 to i32
    %c0_i32_10 = arith.constant 0 : i32
    %23 = arith.cmpi ne, %22, %c0_i32_10 : i32
    scf.if %23 {
      %c0_11 = arith.constant 0 : index
      %c0_12 = arith.constant 0 : index
      %24 = vector.load %arg6[%c0_11, %c0_12] : memref<16x256xf32, #tpu.memory_space<vmem>>, vector<16x256xf32>
      %25 = arith.addf %24, %17 : vector<16x256xf32>
      %c0_13 = arith.constant 0 : index
      %c0_14 = arith.constant 0 : index
      %26 = vector.load %arg5[%c0_13, %c0_14] : memref<16x256xf32, #tpu.memory_space<vmem>>, vector<16x256xf32>
      tpu.vector_store %arg5[%c0_13, %c0_14], %25 {strides = array<i32>} : memref<16x256xf32, #tpu.memory_space<vmem>>, vector<16x256xf32>,
    } else {
    }
    return
  }
  func.func @transform_0(%arg0: i32, %arg1: i32) -> (i32, i32) {
    %c0_i32 = arith.constant 0 : i32
    %c0_i32_0 = arith.constant 0 : i32
    return %arg0, %c0_i32 : i32, i32
  }
  func.func @transform_1(%arg0: i32, %arg1: i32) -> (i32, i32) {
    %c0_i32 = arith.constant 0 : i32
    %c0_i32_0 = arith.constant 0 : i32
    return %c0_i32, %arg1 : i32, i32
  }
  func.func @transform_2(%arg0: i32, %arg1: i32) -> (i32, i32) {
    %c0_i32 = arith.constant 0 : i32
    %c0_i32_0 = arith.constant 0 : i32
    return %arg1, %c0_i32 : i32, i32
  }
  func.func @transform_3(%arg0: i32, %arg1: i32) -> (i32, i32) {
    %c0_i32 = arith.constant 0 : i32
    %c0_i32_0 = arith.constant 0 : i32
    return %arg0, %c0_i32 : i32, i32
  }
}

</mosaic_0001>

<llo_original>
// kernel: feed_forward_packed.1
$region0: #{feed_forward_packed.1}
  #allocation0 [shape = 'u32[]', space=smem, size = 0x4, offset = 0x4, fixed_abs, tag = 'smem constant byte address 0x4 - core index']
  #allocation1 [shape = 'u32[144,128]{1,0:T(1,128)}', space=vmem, size = 0x12000, scoped, tag = 'internal scratch']
  #allocation2 [shape = 'f32[16,256]{1,0:T(8,128)}', space=vmem, size = 0x4000, scoped, tag = 'scratch operand']
  %s0 = inlined_call_operand.vmem [shape: bf16[16,256], index: 0, kind: input, shape index: {}]
  %s1 = inlined_call_operand.hbm [shape: bf16[256,1536], index: 1, kind: input, shape index: {}]
  %s2 = inlined_call_operand.hbm [shape: bf16[768,256], index: 2, kind: input, shape index: {}]
  %s3 = inlined_call_operand.hbm [shape: f32[16,256], index: 3, kind: output, shape index: {}]
  %s4 = sld [smem:[#allocation0]]
  $region65: #{feed_forward_packed.1} parent=0
    _
  %s6 = ssub.s32 1, %s4
  %s7 = scalar_select 0, %s6, %s4
  $region1: #{feed_forward_packed.1} parent=0
    #allocation3 [shape = 'u8[524288]{0}', space=vmem, size = 0x80000, scoped, tag = 'input window, operand 1']
    #allocation4 [shape = 's32[2]{0}', space=sflag, size = 0x8, scoped, tag = 'scoped memory for feed_forward_packed.1']
    #allocation5 [shape = 's32[2]{0}', space=sflag, size = 0x8, scoped, tag = 'scoped memory for feed_forward_packed.1']
    #allocation6 [shape = 'u8[262144]{0}', space=vmem, size = 0x40000, scoped, tag = 'input window, operand 2']
    #allocation7 [shape = 's32[2]{0}', space=sflag, size = 0x8, scoped, tag = 'scoped memory for feed_forward_packed.1']
    #allocation8 [shape = 'u8[16384]{0}', space=vmem, size = 0x4000, scoped, tag = 'output window, operand 0, single buffered']
    %8 = vsyncpa [#allocation4], 0
    %s9 = scalar_lea.sflag [#allocation4], 1
    %10 = vsyncpa %s9, 0
    %11 = vsyncpa [#allocation7], 0
    %s12 = scalar_lea.sflag [#allocation7], 1
    %13 = vsyncpa %s12, 0
    %14 = vsyncpa [#allocation5], 0
    loop: start=0, step=1, limit=5
    $region2: #{feed_forward_packed.1} parent=1 // loop_pre_header
      _
    $region3: #{feed_forward_packed.1} parent=1 // loop_header
      %s16 = sphi 0, %s20
      %p17 = scmp.ge.s32.totalorder %s16, 5
      %s23 = sphi 0, %s35
      %s24 = sphi 0, %s31
      %s25 = sphi 0, %s23
      %s26 = sphi 0, %s24
      %s27 = sphi 0, %s25
      %s28 = sphi 0, %s26
      %s38 = sphi 0, %s40
      %s41 = sphi 0, %s38
      %s42 = sphi 0, %s41
      %s58 = sphi 0, %s42
      %s64 = sphi 0, %s66
      %s67 = sphi 0, %s64
      %s68 = sphi 0, %s67
      %s84 = sphi 0, %s68
      %s90 = sphi 0, %s92
      %s93 = sphi 0, %s90
      %s94 = sphi 0, %s93
      %s110 = sphi 0, %s94
      %s116 = sphi 0, %s118
      %s119 = sphi 0, %s116
      %s120 = sphi 0, %s119
      %s136 = sphi 0, %s120
    $region4: #{feed_forward_packed.1} parent=1 // loop_header_branch
      %19 = sbr.rel (%p17) target = $region8
    $region5: #{feed_forward_packed.1} parent=1 // loop_body
      %s21 = ssub.s32 %s16, 1
      %s22 = ssub.s32 %s16, 2
      %s29 = sadd.s32 1, %s24
      %p30 = scmp.ge.s32.totalorder %s29, 3
      %s31 = scalar_select %p30, 0, %s29
      %s32 = sadd.s32 1, %s23
      %s33 = scalar_select %p30, %s32, %s23
      %p34 = scmp.ge.s32.totalorder %s33, 1
      %s35 = scalar_select %p34, 0, %s33
      %s36 = ssub.s32 %s23, %s35
      %p37 = scmp.eq.s32.totalorder %s36, 0
      %s39 = sadd.s32 %s38, 1
      %s40 = scalar_select %p37, %s38, %s39
      %p43 = pneg %p37
      %p44 = scmp.eq.s32.totalorder %s16, 2
      %p45 = por %p43, %p44
      %p46 = scmp.ne.s32.totalorder %s38, %s41
      %p47 = scmp.eq.s32.totalorder %s16, 0
      %p48 = por %p46, %p47
      %p49 = scmp.ne.s32.totalorder %s38, %s41
      %p50 = scmp.eq.s32.totalorder %s21, 2
      %p51 = por %p49, %p50
      %p52 = scmp.ne.s32.totalorder %s41, %s42
      %p53 = scmp.eq.s32.totalorder %s21, 0
      %p54 = por %p52, %p53
      %p55 = scmp.ne.s32.totalorder %s41, %s42
      %p56 = scmp.eq.s32.totalorder %s22, 2
      %p57 = por %p55, %p56
      %p59 = scmp.ne.s32.totalorder %s42, %s58
      %p60 = scmp.eq.s32.totalorder %s22, 0
      %p61 = por %p59, %p60
      %s62 = ssub.s32 %s24, %s31
      %p63 = scmp.eq.s32.totalorder %s62, 0
      %s65 = sadd.s32 %s64, 1
      %s66 = scalar_select %p63, %s64, %s65
      %p69 = pneg %p63
      %p70 = scmp.eq.s32.totalorder %s16, 2
      %p71 = por %p69, %p70
      %p72 = scmp.ne.s32.totalorder %s64, %s67
      %p73 = scmp.eq.s32.totalorder %s16, 0
      %p74 = por %p72, %p73
      %p75 = scmp.ne.s32.totalorder %s64, %s67
      %p76 = scmp.eq.s32.totalorder %s21, 2
      %p77 = por %p75, %p76
      %p78 = scmp.ne.s32.totalorder %s67, %s68
      %p79 = scmp.eq.s32.totalorder %s21, 0
      %p80 = por %p78, %p79
      %p81 = scmp.ne.s32.totalorder %s67, %s68
      %p82 = scmp.eq.s32.totalorder %s22, 2
      %p83 = por %p81, %p82
      %p85 = scmp.ne.s32.totalorder %s68, %s84
      %p86 = scmp.eq.s32.totalorder %s22, 0
      %p87 = por %p85, %p86
      %s88 = ssub.s32 %s24, %s31
      %p89 = scmp.eq.s32.totalorder %s88, 0
      %s91 = sadd.s32 %s90, 1
      %s92 = scalar_select %p89, %s90, %s91
      %p95 = pneg %p89
      %p96 = scmp.eq.s32.totalorder %s16, 2
      %p97 = por %p95, %p96
      %p98 = scmp.ne.s32.totalorder %s90, %s93
      %p99 = scmp.eq.s32.totalorder %s16, 0
      %p100 = por %p98, %p99
      %p101 = scmp.ne.s32.totalorder %s90, %s93
      %p102 = scmp.eq.s32.totalorder %s21, 2
      %p103 = por %p101, %p102
      %p104 = scmp.ne.s32.totalorder %s93, %s94
      %p105 = scmp.eq.s32.totalorder %s21, 0
      %p106 = por %p104, %p105
      %p107 = scmp.ne.s32.totalorder %s93, %s94
      %p108 = scmp.eq.s32.totalorder %s22, 2
      %p109 = por %p107, %p108
      %p111 = scmp.ne.s32.totalorder %s94, %s110
      %p112 = scmp.eq.s32.totalorder %s22, 0
      %p113 = por %p111, %p112
      %s114 = ssub.s32 %s23, %s35
      %p115 = scmp.eq.s32.totalorder %s114, 0
      %s117 = sadd.s32 %s116, 1
      %s118 = scalar_select %p115, %s116, %s117
      %p121 = pneg %p115
      %p122 = scmp.eq.s32.totalorder %s16, 2
      %p123 = por %p121, %p122
      %p124 = scmp.ne.s32.totalorder %s116, %s119
      %p125 = scmp.eq.s32.totalorder %s16, 0
      %p126 = por %p124, %p125
      %p127 = scmp.ne.s32.totalorder %s116, %s119
      %p128 = scmp.eq.s32.totalorder %s21, 2
      %p129 = por %p127, %p128
      %p130 = scmp.ne.s32.totalorder %s119, %s120
      %p131 = scmp.eq.s32.totalorder %s21, 0
      %p132 = por %p130, %p131
      %p133 = scmp.ne.s32.totalorder %s119, %s120
      %p134 = scmp.eq.s32.totalorder %s22, 2
      %p135 = por %p133, %p134
      %p137 = scmp.ne.s32.totalorder %s120, %s136
      %p138 = scmp.eq.s32.totalorder %s22, 0
      %p139 = por %p137, %p138
      %p140 = scmp.le.s32.totalorder 1, %s16
      %p141 = scmp.lt.s32.totalorder %s16, 4
      %p142 = pnand %p140, %p141
      %p143 = pneg %p142
      // Predicated region
      $region9: #{feed_forward_packed.1} parent=5 // pred_check
        _
      $region10: #{feed_forward_packed.1} parent=5 // pred_check_branch
        %145 = sbr.rel (%p142) target = $region12
      $region11: #{feed_forward_packed.1} parent=5 // pred_region
        %s146 = ssub.s32 %s16, 1
        // Predicated region
        $region13: #{feed_forward_packed.1} parent=11 // pred_check
          %p147 = pneg %p54
        $region14: #{feed_forward_packed.1} parent=11 // pred_check_branch
          %149 = sbr.rel (%p147) target = $region16
        $region15: #{feed_forward_packed.1} parent=11 // pred_region
          %s150 = smul.u32 2, %s25
          %p151 = scmp.lt.s32.totalorder %s150, 1
          %s152 = scalar_select %p151, %s150, 1
          %s153 = smul.addr %s152, 2
          %s154 = smul.addr %s153, 4
          %s155 = scalar_lea.vmem %s0, %s154
          %s156 = smul.u32 2, %s25
        $region16: #{feed_forward_packed.1} parent=11 // pred_fallthru
          _
      $region12: #{feed_forward_packed.1} parent=5 // pred_fallthru
        _
      %p157 = scmp.lt.s32.totalorder %s16, 3
      // Predicated region
      $region17: #{feed_forward_packed.1} parent=5 // pred_check
        %p158 = pneg %p157
      $region18: #{feed_forward_packed.1} parent=5 // pred_check_branch
        %160 = sbr.rel (%p158) target = $region20
      $region19: #{feed_forward_packed.1} parent=5 // pred_region
        // Predicated region
        $region21: #{feed_forward_packed.1} parent=19 // pred_check
          %p161 = pneg %p74
        $region22: #{feed_forward_packed.1} parent=19 // pred_check_branch
          %163 = sbr.rel (%p161) target = $region24
        $region23: #{feed_forward_packed.1} parent=19 // pred_region
          %s164 = sand.u32 %s64, 1
          %s165 = scalar_lea.sflag [#allocation4], %s164
          %s166 = sand.u32 %s64, 1
          %s167 = smul.addr %s166, 512
          %s168 = scalar_lea.vmem [#allocation3], %s167
          %s169 = smul.u32 4, %s24
          %s171 = ssub.s32 8192, 8192
          %172 = vsyncadd %s165, %s171
          %s173 = smul.addr %s169, 64
          %s174 = scalar_lea.hbm %s1, %s173
          %s175 = sshll.u32 %s168, 4
          %s176 = int_to_ptr.vmem [resolvable:$true] %s175
          %181 = dma.hbm_to_vmem [thread:$0]  %s174, 8192, %s176, %s165, 768, 256, 16
        $region24: #{feed_forward_packed.1} parent=19 // pred_fallthru
          _
        // Predicated region
        $region25: #{feed_forward_packed.1} parent=19 // pred_check
          %p182 = pneg %p100
        $region26: #{feed_forward_packed.1} parent=19 // pred_check_branch
          %184 = sbr.rel (%p182) target = $region28
        $region27: #{feed_forward_packed.1} parent=19 // pred_region
          %s185 = sand.u32 %s90, 1
          %s186 = scalar_lea.sflag [#allocation7], %s185
          %s187 = sand.u32 %s90, 1
          %s188 = smul.addr %s187, 256
          %s189 = scalar_lea.vmem [#allocation6], %s188
          %s190 = smul.u32 32, %s24
          %s192 = ssub.s32 4096, 4096
          %193 = vsyncadd %s186, %s192
          %s194 = smul.addr %s190, 2
          %s195 = smul.addr %s194, 64
          %s196 = scalar_lea.hbm %s2, %s195
          %s197 = sshll.u32 %s189, 4
          %s198 = int_to_ptr.vmem [resolvable:$true] %s197
          %203 = dma.hbm_to_vmem [thread:$0]  %s196, 4096, %s198, %s186, 128, 128, 8
        $region28: #{feed_forward_packed.1} parent=19 // pred_fallthru
          _
      $region20: #{feed_forward_packed.1} parent=5 // pred_fallthru
        _
      %p204 = scmp.le.s32.totalorder 1, %s16
      %p205 = scmp.lt.s32.totalorder %s16, 4
      %p206 = pnand %p204, %p205
      %p207 = pneg %p206
      // Predicated region
      $region29: #{feed_forward_packed.1} parent=5 // pred_check
        _
      $region30: #{feed_forward_packed.1} parent=5 // pred_check_branch
        %209 = sbr.rel (%p206) target = $region32
      $region31: #{feed_forward_packed.1} parent=5 // pred_region
        %s210 = ssub.s32 %s16, 1
        %s211 = sand.u32 %s67, 1
        %s212 = scalar_lea.sflag [#allocation4], %s211
        %s213 = sand.u32 %s67, 1
        %s214 = smul.addr %s213, 512
        %s215 = scalar_lea.vmem [#allocation3], %s214
        // Predicated region
        $region33: #{feed_forward_packed.1} parent=31 // pred_check
          %p216 = pneg %p80
        $region34: #{feed_forward_packed.1} parent=31 // pred_check_branch
          %218 = sbr.rel (%p216) target = $region36
        $region35: #{feed_forward_packed.1} parent=31 // pred_region
          %219 = dma.done %s212, 8192
        $region36: #{feed_forward_packed.1} parent=31 // pred_fallthru
          _
        %s220 = sand.u32 %s93, 1
        %s221 = scalar_lea.sflag [#allocation7], %s220
        %s222 = sand.u32 %s93, 1
        %s223 = smul.addr %s222, 256
        %s224 = scalar_lea.vmem [#allocation6], %s223
        // Predicated region
        $region37: #{feed_forward_packed.1} parent=31 // pred_check
          %p225 = pneg %p106
        $region38: #{feed_forward_packed.1} parent=31 // pred_check_branch
          %227 = sbr.rel (%p225) target = $region40
        $region39: #{feed_forward_packed.1} parent=31 // pred_region
          %228 = dma.done %s221, 4096
        $region40: #{feed_forward_packed.1} parent=31 // pred_fallthru
          _
        %s229 = smul.u32 2, %s25
        %p230 = scmp.lt.s32.totalorder %s229, 1
        %s231 = scalar_select %p230, %s229, 1
        %s232 = smul.addr %s231, 2
        %s233 = smul.addr %s232, 4
        %s234 = scalar_lea.vmem %s0, %s233
        %p235 = pneg %p54
        %p236 = pneg %p51
        %s237 = sand.u32 %s67, 1
        %s238 = scalar_lea.sflag [#allocation4], %s237
        %s239 = sand.u32 %s67, 1
        %s240 = smul.addr %s239, 512
        %s241 = scalar_lea.vmem [#allocation3], %s240
        %p242 = pneg %p80
        %p243 = pneg %p77
        %s244 = sand.u32 %s93, 1
        %s245 = scalar_lea.sflag [#allocation7], %s244
        %s246 = sand.u32 %s93, 1
        %s247 = smul.addr %s246, 256
        %s248 = scalar_lea.vmem [#allocation6], %s247
        %p249 = pneg %p106
        %p250 = pneg %p103
        %p251 = pneg %p132
        %p252 = pneg %p129
        %s253 = smul.u32 2, %s25
        %p254 = scmp.lt.s32.totalorder %s253, 1
        %s255 = scalar_select %p254, %s253, 1
        %s256 = smul.addr %s255, 2
        %s257 = smul.addr %s256, 4
        %s258 = scalar_lea.vmem %s0, %s257
        %s259 = smul.u32 2, %s25
        %s260 = smul.u32 4, %s26
        %s261 = smul.u32 32, %s26
        %s262 = smul.u32 2, %s25
        %p263 = scmp.eq.s32.totalorder %s26, 0
        // Predicated region
        $region41: #{feed_forward_packed.1} parent=31 // pred_check
          %p264 = pneg %p263
        $region42: #{feed_forward_packed.1} parent=31 // pred_check_branch
          %266 = sbr.rel (%p264) target = $region44
        $region43: #{feed_forward_packed.1} parent=31 // pred_region
          %267 = vst [vmem:[#allocation2] sm:$0xff] 0.0
          %268 = vst [vmem:[#allocation2 + $0x8] sm:$0xff] 0.0
          %269 = vst [vmem:[#allocation2 + $0x10] sm:$0xff] 0.0
          %270 = vst [vmem:[#allocation2 + $0x18] sm:$0xff] 0.0
        $region44: #{feed_forward_packed.1} parent=31 // pred_fallthru
          _
        %v271 = vld [vmem:[%s258] sm:$0xff]
        %v272 = vld [vmem:[%s258 + $0x8] sm:$0xff]
        %v273 = vld [vmem:[%s215] sm:$0xff]
        %v274 = vld [vmem:[%s215 + $0x8] sm:$0xff]
        %v275 = vld [vmem:[%s215 + $0x10] sm:$0xff]
        %v276 = vld [vmem:[%s215 + $0x18] sm:$0xff]
        %v277 = vld [vmem:[%s215 + $0x20] sm:$0xff]
        %v278 = vld [vmem:[%s215 + $0x28] sm:$0xff]
        %v279 = vld [vmem:[%s215 + $0x30] sm:$0xff]
        %v280 = vld [vmem:[%s215 + $0x38] sm:$0xff]
        %v281 = vld [vmem:[%s215 + $0x40] sm:$0xff]
        %v282 = vld [vmem:[%s215 + $0x48] sm:$0xff]
        %v283 = vld [vmem:[%s215 + $0x50] sm:$0xff]
        %v284 = vld [vmem:[%s215 + $0x58] sm:$0xff]
        %v285 = vld [vmem:[%s215 + $0x60] sm:$0xff]
        %v286 = vld [vmem:[%s215 + $0x68] sm:$0xff]
        %v287 = vld [vmem:[%s215 + $0x70] sm:$0xff]
        %v288 = vld [vmem:[%s215 + $0x78] sm:$0xff]
        %v289 = vld [vmem:[%s215 + $0x80] sm:$0xff]
        %v290 = vld [vmem:[%s215 + $0x88] sm:$0xff]
        %v291 = vld [vmem:[%s215 + $0x90] sm:$0xff]
        %v292 = vld [vmem:[%s215 + $0x98] sm:$0xff]
        %v293 = vld [vmem:[%s215 + $0xa0] sm:$0xff]
        %v294 = vld [vmem:[%s215 + $0xa8] sm:$0xff]
        %v295 = vld [vmem:[%s215 + $0xb0] sm:$0xff]
        %v296 = vld [vmem:[%s215 + $0xb8] sm:$0xff]
        %v297 = vld [vmem:[%s215 + $0xc0] sm:$0xff]
        %v298 = vld [vmem:[%s215 + $0xc8] sm:$0xff]
        %v299 = vld [vmem:[%s215 + $0xd0] sm:$0xff]
        %v300 = vld [vmem:[%s215 + $0xd8] sm:$0xff]
        %v301 = vld [vmem:[%s215 + $0xe0] sm:$0xff]
        %v302 = vld [vmem:[%s215 + $0xe8] sm:$0xff]
        %v303 = vld [vmem:[%s215 + $0xf0] sm:$0xff]
        %v304 = vld [vmem:[%s215 + $0xf8] sm:$0xff]
        %v305 = vld [vmem:[%s215 + $0x100] sm:$0xff]
        %v306 = vld [vmem:[%s215 + $0x108] sm:$0xff]
        %v307 = vld [vmem:[%s215 + $0x110] sm:$0xff]
        %v308 = vld [vmem:[%s215 + $0x118] sm:$0xff]
        %v309 = vld [vmem:[%s215 + $0x120] sm:$0xff]
        %v310 = vld [vmem:[%s215 + $0x128] sm:$0xff]
        %v311 = vld [vmem:[%s215 + $0x130] sm:$0xff]
        %v312 = vld [vmem:[%s215 + $0x138] sm:$0xff]
        %v313 = vld [vmem:[%s215 + $0x140] sm:$0xff]
        %v314 = vld [vmem:[%s215 + $0x148] sm:$0xff]
        %v315 = vld [vmem:[%s215 + $0x150] sm:$0xff]
        %v316 = vld [vmem:[%s215 + $0x158] sm:$0xff]
        %v317 = vld [vmem:[%s215 + $0x160] sm:$0xff]
        %v318 = vld [vmem:[%s215 + $0x168] sm:$0xff]
        %v319 = vld [vmem:[%s215 + $0x170] sm:$0xff]
        %v320 = vld [vmem:[%s215 + $0x178] sm:$0xff]
        %v321 = vld [vmem:[%s215 + $0x180] sm:$0xff]
        %v322 = vld [vmem:[%s215 + $0x188] sm:$0xff]
        %v323 = vld [vmem:[%s215 + $0x190] sm:$0xff]
        %v324 = vld [vmem:[%s215 + $0x198] sm:$0xff]
        %v325 = vld [vmem:[%s215 + $0x1a0] sm:$0xff]
        %v326 = vld [vmem:[%s215 + $0x1a8] sm:$0xff]
        %v327 = vld [vmem:[%s215 + $0x1b0] sm:$0xff]
        %v328 = vld [vmem:[%s215 + $0x1b8] sm:$0xff]
        %v329 = vld [vmem:[%s215 + $0x1c0] sm:$0xff]
        %v330 = vld [vmem:[%s215 + $0x1c8] sm:$0xff]
        %v331 = vld [vmem:[%s215 + $0x1d0] sm:$0xff]
        %v332 = vld [vmem:[%s215 + $0x1d8] sm:$0xff]
        %v333 = vld [vmem:[%s215 + $0x1e0] sm:$0xff]
        %v334 = vld [vmem:[%s215 + $0x1e8] sm:$0xff]
        %v335 = vld [vmem:[%s215 + $0x1f0] sm:$0xff]
        %v336 = vld [vmem:[%s215 + $0x1f8] sm:$0xff]
        %v339 = vunpack.c.l.b16 %v271
        %v340 = vunpack.c.h.b16 %v271
        %v341 = vunpack.c.l.b16 %v272
        %v342 = vunpack.c.h.b16 %v272
        %v343 = vpack.c.b16 %v341, %v339
        %v344 = vpack.c.b16 %v342, %v340
        %v411 = vunpack.c.l.b16 %v273
        %v412 = vunpack.c.h.b16 %v273
        %v413 = vunpack.c.l.b16 %v274
        %v414 = vunpack.c.h.b16 %v274
        %v415 = vunpack.c.l.b16 %v275
        %v416 = vunpack.c.h.b16 %v275
        %v417 = vunpack.c.l.b16 %v276
        %v418 = vunpack.c.h.b16 %v276
        %v419 = vunpack.c.l.b16 %v277
        %v420 = vunpack.c.h.b16 %v277
        %v421 = vunpack.c.l.b16 %v278
        %v422 = vunpack.c.h.b16 %v278
        %v423 = vunpack.c.l.b16 %v279
        %v424 = vunpack.c.h.b16 %v279
        %v425 = vunpack.c.l.b16 %v280
        %v426 = vunpack.c.h.b16 %v280
        %v427 = vunpack.c.l.b16 %v281
        %v428 = vunpack.c.h.b16 %v281
        %v429 = vunpack.c.l.b16 %v282
        %v430 = vunpack.c.h.b16 %v282
        %v431 = vunpack.c.l.b16 %v283
        %v432 = vunpack.c.h.b16 %v283
        %v433 = vunpack.c.l.b16 %v284
        %v434 = vunpack.c.h.b16 %v284
        %v435 = vunpack.c.l.b16 %v285
        %v436 = vunpack.c.h.b16 %v285
        %v437 = vunpack.c.l.b16 %v286
        %v438 = vunpack.c.h.b16 %v286
        %v439 = vunpack.c.l.b16 %v287
        %v440 = vunpack.c.h.b16 %v287
        %v441 = vunpack.c.l.b16 %v288
        %v442 = vunpack.c.h.b16 %v288
        %v443 = vunpack.c.l.b16 %v289
        %v444 = vunpack.c.h.b16 %v289
        %v445 = vunpack.c.l.b16 %v290
        %v446 = vunpack.c.h.b16 %v290
        %v447 = vunpack.c.l.b16 %v291
        %v448 = vunpack.c.h.b16 %v291
        %v449 = vunpack.c.l.b16 %v292
        %v450 = vunpack.c.h.b16 %v292
        %v451 = vunpack.c.l.b16 %v293
        %v452 = vunpack.c.h.b16 %v293
        %v453 = vunpack.c.l.b16 %v294
        %v454 = vunpack.c.h.b16 %v294
        %v455 = vunpack.c.l.b16 %v295
        %v456 = vunpack.c.h.b16 %v295
        %v457 = vunpack.c.l.b16 %v296
        %v458 = vunpack.c.h.b16 %v296
        %v459 = vunpack.c.l.b16 %v297
        %v460 = vunpack.c.h.b16 %v297
        %v461 = vunpack.c.l.b16 %v298
        %v462 = vunpack.c.h.b16 %v298
        %v463 = vunpack.c.l.b16 %v299
        %v464 = vunpack.c.h.b16 %v299
        %v465 = vunpack.c.l.b16 %v300
        %v466 = vunpack.c.h.b16 %v300
        %v467 = vunpack.c.l.b16 %v301
        %v468 = vunpack.c.h.b16 %v301
        %v469 = vunpack.c.l.b16 %v302
        %v470 = vunpack.c.h.b16 %v302
        %v471 = vunpack.c.l.b16 %v303
        %v472 = vunpack.c.h.b16 %v303
        %v473 = vunpack.c.l.b16 %v304
        %v474 = vunpack.c.h.b16 %v304
        %v475 = vunpack.c.l.b16 %v305
        %v476 = vunpack.c.h.b16 %v305
        %v477 = vunpack.c.l.b16 %v306
        %v478 = vunpack.c.h.b16 %v306
        %v479 = vunpack.c.l.b16 %v307
        %v480 = vunpack.c.h.b16 %v307
        %v481 = vunpack.c.l.b16 %v308
        %v482 = vunpack.c.h.b16 %v308
        %v483 = vunpack.c.l.b16 %v309
        %v484 = vunpack.c.h.b16 %v309
        %v485 = vunpack.c.l.b16 %v310
        %v486 = vunpack.c.h.b16 %v310
        %v487 = vunpack.c.l.b16 %v311
        %v488 = vunpack.c.h.b16 %v311
        %v489 = vunpack.c.l.b16 %v312
        %v490 = vunpack.c.h.b16 %v312
        %v491 = vunpack.c.l.b16 %v313
        %v492 = vunpack.c.h.b16 %v313
        %v493 = vunpack.c.l.b16 %v314
        %v494 = vunpack.c.h.b16 %v314
        %v495 = vunpack.c.l.b16 %v315
        %v496 = vunpack.c.h.b16 %v315
        %v497 = vunpack.c.l.b16 %v316
        %v498 = vunpack.c.h.b16 %v316
        %v499 = vunpack.c.l.b16 %v317
        %v500 = vunpack.c.h.b16 %v317
        %v501 = vunpack.c.l.b16 %v318
        %v502 = vunpack.c.h.b16 %v318
        %v503 = vunpack.c.l.b16 %v319
        %v504 = vunpack.c.h.b16 %v319
        %v505 = vunpack.c.l.b16 %v320
        %v506 = vunpack.c.h.b16 %v320
        %v507 = vunpack.c.l.b16 %v321
        %v508 = vunpack.c.h.b16 %v321
        %v509 = vunpack.c.l.b16 %v322
        %v510 = vunpack.c.h.b16 %v322
        %v511 = vunpack.c.l.b16 %v323
        %v512 = vunpack.c.h.b16 %v323
        %v513 = vunpack.c.l.b16 %v324
        %v514 = vunpack.c.h.b16 %v324
        %v515 = vunpack.c.l.b16 %v325
        %v516 = vunpack.c.h.b16 %v325
        %v517 = vunpack.c.l.b16 %v326
        %v518 = vunpack.c.h.b16 %v326
        %v519 = vunpack.c.l.b16 %v327
        %v520 = vunpack.c.h.b16 %v327
        %v521 = vunpack.c.l.b16 %v328
        %v522 = vunpack.c.h.b16 %v328
        %v523 = vunpack.c.l.b16 %v329
        %v524 = vunpack.c.h.b16 %v329
        %v525 = vunpack.c.l.b16 %v330
        %v526 = vunpack.c.h.b16 %v330
        %v527 = vunpack.c.l.b16 %v331
        %v528 = vunpack.c.h.b16 %v331
        %v529 = vunpack.c.l.b16 %v332
        %v530 = vunpack.c.h.b16 %v332
        %v531 = vunpack.c.l.b16 %v333
        %v532 = vunpack.c.h.b16 %v333
        %v533 = vunpack.c.l.b16 %v334
        %v534 = vunpack.c.h.b16 %v334
        %v535 = vunpack.c.l.b16 %v335
        %v536 = vunpack.c.h.b16 %v335
        %v537 = vunpack.c.l.b16 %v336
        %v538 = vunpack.c.h.b16 %v336
        %v539 = vpack.c.b16 %v415, %v411
        %v540 = vpack.c.b16 %v416, %v412
        %v541 = vpack.c.b16 %v417, %v413
        %v542 = vpack.c.b16 %v418, %v414
        %v543 = vpack.c.b16 %v423, %v419
        %v544 = vpack.c.b16 %v424, %v420
        %v545 = vpack.c.b16 %v425, %v421
        %v546 = vpack.c.b16 %v426, %v422
        %v547 = vpack.c.b16 %v431, %v427
        %v548 = vpack.c.b16 %v432, %v428
        %v549 = vpack.c.b16 %v433, %v429
        %v550 = vpack.c.b16 %v434, %v430
        %v551 = vpack.c.b16 %v439, %v435
        %v552 = vpack.c.b16 %v440, %v436
        %v553 = vpack.c.b16 %v441, %v437
        %v554 = vpack.c.b16 %v442, %v438
        %v555 = vpack.c.b16 %v447, %v443
        %v556 = vpack.c.b16 %v448, %v444
        %v557 = vpack.c.b16 %v449, %v445
        %v558 = vpack.c.b16 %v450, %v446
        %v559 = vpack.c.b16 %v455, %v451
        %v560 = vpack.c.b16 %v456, %v452
        %v561 = vpack.c.b16 %v457, %v453
        %v562 = vpack.c.b16 %v458, %v454
        %v563 = vpack.c.b16 %v463, %v459
        %v564 = vpack.c.b16 %v464, %v460
        %v565 = vpack.c.b16 %v465, %v461
        %v566 = vpack.c.b16 %v466, %v462
        %v567 = vpack.c.b16 %v471, %v467
        %v568 = vpack.c.b16 %v472, %v468
        %v569 = vpack.c.b16 %v473, %v469
        %v570 = vpack.c.b16 %v474, %v470
        %v571 = vpack.c.b16 %v479, %v475
        %v572 = vpack.c.b16 %v480, %v476
        %v573 = vpack.c.b16 %v481, %v477
        %v574 = vpack.c.b16 %v482, %v478
        %v575 = vpack.c.b16 %v487, %v483
        %v576 = vpack.c.b16 %v488, %v484
        %v577 = vpack.c.b16 %v489, %v485
        %v578 = vpack.c.b16 %v490, %v486
        %v579 = vpack.c.b16 %v495, %v491
        %v580 = vpack.c.b16 %v496, %v492
        %v581 = vpack.c.b16 %v497, %v493
        %v582 = vpack.c.b16 %v498, %v494
        %v583 = vpack.c.b16 %v503, %v499
        %v584 = vpack.c.b16 %v504, %v500
        %v585 = vpack.c.b16 %v505, %v501
        %v586 = vpack.c.b16 %v506, %v502
        %v587 = vpack.c.b16 %v511, %v507
        %v588 = vpack.c.b16 %v512, %v508
        %v589 = vpack.c.b16 %v513, %v509
        %v590 = vpack.c.b16 %v514, %v510
        %v591 = vpack.c.b16 %v519, %v515
        %v592 = vpack.c.b16 %v520, %v516
        %v593 = vpack.c.b16 %v521, %v517
        %v594 = vpack.c.b16 %v522, %v518
        %v595 = vpack.c.b16 %v527, %v523
        %v596 = vpack.c.b16 %v528, %v524
        %v597 = vpack.c.b16 %v529, %v525
        %v598 = vpack.c.b16 %v530, %v526
        %v599 = vpack.c.b16 %v535, %v531
        %v600 = vpack.c.b16 %v536, %v532
        %v601 = vpack.c.b16 %v537, %v533
        %v602 = vpack.c.b16 %v538, %v534
        %667 = vmatprep.subr.bf16.mxu0 %v540
        %668 = vmatpush1.bf16.msra.mxu0 %v539
        %669 = vmatprep.subr.bf16.mxu0 %v544
        %670 = vmatpush1.bf16.msra.mxu0 %v543
        %671 = vmatprep.subr.bf16.mxu0 %v548
        %672 = vmatpush1.bf16.msra.mxu0 %v547
        %673 = vmatprep.subr.bf16.mxu0 %v552
        %674 = vmatpush1.bf16.msra.mxu0 %v551
        %675 = vmatprep.subr.bf16.mxu0 %v556
        %676 = vmatpush1.bf16.msra.mxu0 %v555
        %677 = vmatprep.subr.bf16.mxu0 %v560
        %678 = vmatpush1.bf16.msra.mxu0 %v559
        %679 = vmatprep.subr.bf16.mxu0 %v564
        %680 = vmatpush1.bf16.msra.mxu0 %v563
        %681 = vmatprep.subr.bf16.mxu0 %v568
        %682 = vmatpush1.bf16.msra.mxu0 %v567
        %683 = vmatprep.subr.bf16.mxu0 %v572
        %684 = vmatpush1.bf16.msra.mxu0 %v571
        %685 = vmatprep.subr.bf16.mxu0 %v576
        %686 = vmatpush1.bf16.msra.mxu0 %v575
        %687 = vmatprep.subr.bf16.mxu0 %v580
        %688 = vmatpush1.bf16.msra.mxu0 %v579
        %689 = vmatprep.subr.bf16.mxu0 %v584
        %690 = vmatpush1.bf16.msra.mxu0 %v583
        %691 = vmatprep.subr.bf16.mxu0 %v588
        %692 = vmatpush1.bf16.msra.mxu0 %v587
        %693 = vmatprep.subr.bf16.mxu0 %v592
        %694 = vmatpush1.bf16.msra.mxu0 %v591
        %695 = vmatprep.subr.bf16.mxu0 %v596
        %696 = vmatpush1.bf16.msra.mxu0 %v595
        %697 = vmatprep.subr.bf16.mxu0 %v600
        %698 = vmatpush1.bf16.msra.mxu0 %v599
        %699 = vmatprep.mubr.bf16.mxu0 %v344
        %700 = vmatmul.mubr.bf16.gmra.mrb[0].mxu0 %v343
        %v701 = vpop.f32.mrb[0].mxu0
        %v702 = vadd.f32 0.0, %v701
        %v703 = vpop.f32.mrb[0].mxu0
        %v704 = vadd.f32 0.0, %v703
        %v705 = vpop.f32.mrb[0].mxu0
        %v706 = vadd.f32 0.0, %v705
        %v707 = vpop.f32.mrb[0].mxu0
        %v708 = vadd.f32 0.0, %v707
        %709 = vdwg.mxu0
        %710 = vmatprep.subr.bf16.mxu0 %v542
        %711 = vmatpush1.bf16.msra.mxu0 %v541
        %712 = vmatprep.subr.bf16.mxu0 %v546
        %713 = vmatpush1.bf16.msra.mxu0 %v545
        %714 = vmatprep.subr.bf16.mxu0 %v550
        %715 = vmatpush1.bf16.msra.mxu0 %v549
        %716 = vmatprep.subr.bf16.mxu0 %v554
        %717 = vmatpush1.bf16.msra.mxu0 %v553
        %718 = vmatprep.subr.bf16.mxu0 %v558
        %719 = vmatpush1.bf16.msra.mxu0 %v557
        %720 = vmatprep.subr.bf16.mxu0 %v562
        %721 = vmatpush1.bf16.msra.mxu0 %v561
        %722 = vmatprep.subr.bf16.mxu0 %v566
        %723 = vmatpush1.bf16.msra.mxu0 %v565
        %724 = vmatprep.subr.bf16.mxu0 %v570
        %725 = vmatpush1.bf16.msra.mxu0 %v569
        %726 = vmatprep.subr.bf16.mxu0 %v574
        %727 = vmatpush1.bf16.msra.mxu0 %v573
        %728 = vmatprep.subr.bf16.mxu0 %v578
        %729 = vmatpush1.bf16.msra.mxu0 %v577
        %730 = vmatprep.subr.bf16.mxu0 %v582
        %731 = vmatpush1.bf16.msra.mxu0 %v581
        %732 = vmatprep.subr.bf16.mxu0 %v586
        %733 = vmatpush1.bf16.msra.mxu0 %v585
        %734 = vmatprep.subr.bf16.mxu0 %v590
        %735 = vmatpush1.bf16.msra.mxu0 %v589
        %736 = vmatprep.subr.bf16.mxu0 %v594
        %737 = vmatpush1.bf16.msra.mxu0 %v593
        %738 = vmatprep.subr.bf16.mxu0 %v598
        %739 = vmatpush1.bf16.msra.mxu0 %v597
        %740 = vmatprep.subr.bf16.mxu0 %v602
        %741 = vmatpush1.bf16.msra.mxu0 %v601
        %742 = vmatprep.mubr.bf16.mxu0 %v344
        %743 = vmatmul.mubr.bf16.gmra.mrb[0].mxu0 %v343
        %v744 = vpop.f32.mrb[0].mxu0
        %v745 = vadd.f32 0.0, %v744
        %v746 = vpop.f32.mrb[0].mxu0
        %v747 = vadd.f32 0.0, %v746
        %v748 = vpop.f32.mrb[0].mxu0
        %v749 = vadd.f32 0.0, %v748
        %v750 = vpop.f32.mrb[0].mxu0
        %v751 = vadd.f32 0.0, %v750
        %752 = vdwg.mxu0
        %v753 = vxor.u32 %v702, 2147483648
        %v754 = vxor.u32 %v704, 2147483648
        %v755 = vxor.u32 %v706, 2147483648
        %v756 = vxor.u32 %v708, 2147483648
        %v757 = vmul.f32 %v753, 1.442695
        %v758 = vpow.pop %v757
        %v759 = vmul.f32 %v754, 1.442695
        %v760 = vpow.pop %v759
        %v761 = vmul.f32 %v755, 1.442695
        %v762 = vpow.pop %v761
        %v763 = vmul.f32 %v756, 1.442695
        %v764 = vpow.pop %v763
        %v765 = vadd.f32 %v758, 1.0
        %v766 = vadd.f32 %v760, 1.0
        %v767 = vadd.f32 %v762, 1.0
        %v768 = vadd.f32 %v764, 1.0
        %v769 = vrcp.pop %v765
        %v770 = vmul.f32 1.0, %v769
        %v771 = vrcp.pop %v766
        %v772 = vmul.f32 1.0, %v771
        %v773 = vrcp.pop %v767
        %v774 = vmul.f32 1.0, %v773
        %v775 = vrcp.pop %v768
        %v776 = vmul.f32 1.0, %v775
        %v777 = vmul.f32 %v702, %v770
        %v778 = vmul.f32 %v704, %v772
        %v779 = vmul.f32 %v706, %v774
        %v780 = vmul.f32 %v708, %v776
        %v781 = vmul.f32 %v777, %v745
        %v782 = vmul.f32 %v778, %v747
        %v783 = vmul.f32 %v779, %v749
        %v784 = vmul.f32 %v780, %v751
        %v785 = vpack.c.bf16 %v783, %v781
        %v786 = vpack.c.bf16 %v784, %v782
        %v787 = vld [vmem:[%s224] sm:$0xff]
        %v788 = vld [vmem:[%s224 + $0x8] sm:$0xff]
        %v789 = vld [vmem:[%s224 + $0x10] sm:$0xff]
        %v790 = vld [vmem:[%s224 + $0x18] sm:$0xff]
        %v791 = vld [vmem:[%s224 + $0x20] sm:$0xff]
        %v792 = vld [vmem:[%s224 + $0x28] sm:$0xff]
        %v793 = vld [vmem:[%s224 + $0x30] sm:$0xff]
        %v794 = vld [vmem:[%s224 + $0x38] sm:$0xff]
        %v795 = vld [vmem:[%s224 + $0x40] sm:$0xff]
        %v796 = vld [vmem:[%s224 + $0x48] sm:$0xff]
        %v797 = vld [vmem:[%s224 + $0x50] sm:$0xff]
        %v798 = vld [vmem:[%s224 + $0x58] sm:$0xff]
        %v799 = vld [vmem:[%s224 + $0x60] sm:$0xff]
        %v800 = vld [vmem:[%s224 + $0x68] sm:$0xff]
        %v801 = vld [vmem:[%s224 + $0x70] sm:$0xff]
        %v802 = vld [vmem:[%s224 + $0x78] sm:$0xff]
        %v803 = vld [vmem:[%s224 + $0x80] sm:$0xff]
        %v804 = vld [vmem:[%s224 + $0x88] sm:$0xff]
        %v805 = vld [vmem:[%s224 + $0x90] sm:$0xff]
        %v806 = vld [vmem:[%s224 + $0x98] sm:$0xff]
        %v807 = vld [vmem:[%s224 + $0xa0] sm:$0xff]
        %v808 = vld [vmem:[%s224 + $0xa8] sm:$0xff]
        %v809 = vld [vmem:[%s224 + $0xb0] sm:$0xff]
        %v810 = vld [vmem:[%s224 + $0xb8] sm:$0xff]
        %v811 = vld [vmem:[%s224 + $0xc0] sm:$0xff]
        %v812 = vld [vmem:[%s224 + $0xc8] sm:$0xff]
        %v813 = vld [vmem:[%s224 + $0xd0] sm:$0xff]
        %v814 = vld [vmem:[%s224 + $0xd8] sm:$0xff]
        %v815 = vld [vmem:[%s224 + $0xe0] sm:$0xff]
        %v816 = vld [vmem:[%s224 + $0xe8] sm:$0xff]
        %v817 = vld [vmem:[%s224 + $0xf0] sm:$0xff]
        %v818 = vld [vmem:[%s224 + $0xf8] sm:$0xff]
        %v851 = vunpack.c.l.b16 %v787
        %v852 = vunpack.c.h.b16 %v787
        %v853 = vunpack.c.l.b16 %v788
        %v854 = vunpack.c.h.b16 %v788
        %v855 = vunpack.c.l.b16 %v789
        %v856 = vunpack.c.h.b16 %v789
        %v857 = vunpack.c.l.b16 %v790
        %v858 = vunpack.c.h.b16 %v790
        %v859 = vunpack.c.l.b16 %v791
        %v860 = vunpack.c.h.b16 %v791
        %v861 = vunpack.c.l.b16 %v792
        %v862 = vunpack.c.h.b16 %v792
        %v863 = vunpack.c.l.b16 %v793
        %v864 = vunpack.c.h.b16 %v793
        %v865 = vunpack.c.l.b16 %v794
        %v866 = vunpack.c.h.b16 %v794
        %v867 = vunpack.c.l.b16 %v795
        %v868 = vunpack.c.h.b16 %v795
        %v869 = vunpack.c.l.b16 %v796
        %v870 = vunpack.c.h.b16 %v796
        %v871 = vunpack.c.l.b16 %v797
        %v872 = vunpack.c.h.b16 %v797
        %v873 = vunpack.c.l.b16 %v798
        %v874 = vunpack.c.h.b16 %v798
        %v875 = vunpack.c.l.b16 %v799
        %v876 = vunpack.c.h.b16 %v799
        %v877 = vunpack.c.l.b16 %v800
        %v878 = vunpack.c.h.b16 %v800
        %v879 = vunpack.c.l.b16 %v801
        %v880 = vunpack.c.h.b16 %v801
        %v881 = vunpack.c.l.b16 %v802
        %v882 = vunpack.c.h.b16 %v802
        %v883 = vunpack.c.l.b16 %v803
        %v884 = vunpack.c.h.b16 %v803
        %v885 = vunpack.c.l.b16 %v804
        %v886 = vunpack.c.h.b16 %v804
        %v887 = vunpack.c.l.b16 %v805
        %v888 = vunpack.c.h.b16 %v805
        %v889 = vunpack.c.l.b16 %v806
        %v890 = vunpack.c.h.b16 %v806
        %v891 = vunpack.c.l.b16 %v807
        %v892 = vunpack.c.h.b16 %v807
        %v893 = vunpack.c.l.b16 %v808
        %v894 = vunpack.c.h.b16 %v808
        %v895 = vunpack.c.l.b16 %v809
        %v896 = vunpack.c.h.b16 %v809
        %v897 = vunpack.c.l.b16 %v810
        %v898 = vunpack.c.h.b16 %v810
        %v899 = vunpack.c.l.b16 %v811
        %v900 = vunpack.c.h.b16 %v811
        %v901 = vunpack.c.l.b16 %v812
        %v902 = vunpack.c.h.b16 %v812
        %v903 = vunpack.c.l.b16 %v813
        %v904 = vunpack.c.h.b16 %v813
        %v905 = vunpack.c.l.b16 %v814
        %v906 = vunpack.c.h.b16 %v814
        %v907 = vunpack.c.l.b16 %v815
        %v908 = vunpack.c.h.b16 %v815
        %v909 = vunpack.c.l.b16 %v816
        %v910 = vunpack.c.h.b16 %v816
        %v911 = vunpack.c.l.b16 %v817
        %v912 = vunpack.c.h.b16 %v817
        %v913 = vunpack.c.l.b16 %v818
        %v914 = vunpack.c.h.b16 %v818
        %v915 = vpack.c.b16 %v853, %v851
        %v916 = vpack.c.b16 %v854, %v852
        %v917 = vpack.c.b16 %v857, %v855
        %v918 = vpack.c.b16 %v858, %v856
        %v919 = vpack.c.b16 %v861, %v859
        %v920 = vpack.c.b16 %v862, %v860
        %v921 = vpack.c.b16 %v865, %v863
        %v922 = vpack.c.b16 %v866, %v864
        %v923 = vpack.c.b16 %v869, %v867
        %v924 = vpack.c.b16 %v870, %v868
        %v925 = vpack.c.b16 %v873, %v871
        %v926 = vpack.c.b16 %v874, %v872
        %v927 = vpack.c.b16 %v877, %v875
        %v928 = vpack.c.b16 %v878, %v876
        %v929 = vpack.c.b16 %v881, %v879
        %v930 = vpack.c.b16 %v882, %v880
        %v931 = vpack.c.b16 %v885, %v883
        %v932 = vpack.c.b16 %v886, %v884
        %v933 = vpack.c.b16 %v889, %v887
        %v934 = vpack.c.b16 %v890, %v888
        %v935 = vpack.c.b16 %v893, %v891
        %v936 = vpack.c.b16 %v894, %v892
        %v937 = vpack.c.b16 %v897, %v895
        %v938 = vpack.c.b16 %v898, %v896
        %v939 = vpack.c.b16 %v901, %v899
        %v940 = vpack.c.b16 %v902, %v900
        %v941 = vpack.c.b16 %v905, %v903
        %v942 = vpack.c.b16 %v906, %v904
        %v943 = vpack.c.b16 %v909, %v907
        %v944 = vpack.c.b16 %v910, %v908
        %v945 = vpack.c.b16 %v913, %v911
        %v946 = vpack.c.b16 %v914, %v912
        %979 = vmatprep.subr.bf16.mxu0 %v916
        %980 = vmatpush1.bf16.msra.mxu0 %v915
        %981 = vmatprep.subr.bf16.mxu0 %v918
        %982 = vmatpush1.bf16.msra.mxu0 %v917
        %983 = vmatprep.subr.bf16.mxu0 %v920
        %984 = vmatpush1.bf16.msra.mxu0 %v919
        %985 = vmatprep.subr.bf16.mxu0 %v922
        %986 = vmatpush1.bf16.msra.mxu0 %v921
        %987 = vmatprep.subr.bf16.mxu0 %v924
        %988 = vmatpush1.bf16.msra.mxu0 %v923
        %989 = vmatprep.subr.bf16.mxu0 %v926
        %990 = vmatpush1.bf16.msra.mxu0 %v925
        %991 = vmatprep.subr.bf16.mxu0 %v928
        %992 = vmatpush1.bf16.msra.mxu0 %v927
        %993 = vmatprep.subr.bf16.mxu0 %v930
        %994 = vmatpush1.bf16.msra.mxu0 %v929
        %995 = vmatprep.subr.bf16.mxu0 %v932
        %996 = vmatpush1.bf16.msra.mxu0 %v931
        %997 = vmatprep.subr.bf16.mxu0 %v934
        %998 = vmatpush1.bf16.msra.mxu0 %v933
        %999 = vmatprep.subr.bf16.mxu0 %v936
        %1000 = vmatpush1.bf16.msra.mxu0 %v935
        %1001 = vmatprep.subr.bf16.mxu0 %v938
        %1002 = vmatpush1.bf16.msra.mxu0 %v937
        %1003 = vmatprep.subr.bf16.mxu0 %v940
        %1004 = vmatpush1.bf16.msra.mxu0 %v939
        %1005 = vmatprep.subr.bf16.mxu0 %v942
        %1006 = vmatpush1.bf16.msra.mxu0 %v941
        %1007 = vmatprep.subr.bf16.mxu0 %v944
        %1008 = vmatpush1.bf16.msra.mxu0 %v943
        %1009 = vmatprep.subr.bf16.mxu0 %v946
        %1010 = vmatpush1.bf16.msra.mxu0 %v945
        %1011 = vmatprep.mubr.bf16.mxu0 %v786
        %1012 = vmatmul.mubr.bf16.gmra.mrb[0].mxu0 %v785
        %v1013 = vpop.f32.mrb[0].mxu0
        %v1014 = vadd.f32 0.0, %v1013
        %v1015 = vpop.f32.mrb[0].mxu0
        %v1016 = vadd.f32 0.0, %v1015
        %v1017 = vpop.f32.mrb[0].mxu0
        %v1018 = vadd.f32 0.0, %v1017
        %v1019 = vpop.f32.mrb[0].mxu0
        %v1020 = vadd.f32 0.0, %v1019
        %1021 = vdwg.mxu0
        %p1022 = scmp.lt.s32.totalorder %s26, 2
        // Predicated region
        $region45: #{feed_forward_packed.1} parent=31 // pred_check
          %p1023 = pneg %p1022
        $region46: #{feed_forward_packed.1} parent=31 // pred_check_branch
          %1025 = sbr.rel (%p1023) target = $region48
        $region47: #{feed_forward_packed.1} parent=31 // pred_region
          %v1026 = vld [vmem:[#allocation2] sm:$0xff]
          %v1027 = vld [vmem:[#allocation2 + $0x8] sm:$0xff]
          %v1028 = vld [vmem:[#allocation2 + $0x10] sm:$0xff]
          %v1029 = vld [vmem:[#allocation2 + $0x18] sm:$0xff]
          %v1030 = vadd.f32 %v1026, %v1014
          %v1031 = vadd.f32 %v1027, %v1016
          %v1032 = vadd.f32 %v1028, %v1018
          %v1033 = vadd.f32 %v1029, %v1020
          %1034 = vst [vmem:[#allocation2] sm:$0xff] %v1030
          %1035 = vst [vmem:[#allocation2 + $0x8] sm:$0xff] %v1031
          %1036 = vst [vmem:[#allocation2 + $0x10] sm:$0xff] %v1032
          %1037 = vst [vmem:[#allocation2 + $0x18] sm:$0xff] %v1033
        $region48: #{feed_forward_packed.1} parent=31 // pred_fallthru
          _
        %p1038 = scmp.eq.s32.totalorder %s26, 2
        // Predicated region
        $region49: #{feed_forward_packed.1} parent=31 // pred_check
          %p1039 = pneg %p1038
        $region50: #{feed_forward_packed.1} parent=31 // pred_check_branch
          %1041 = sbr.rel (%p1039) target = $region52
        $region51: #{feed_forward_packed.1} parent=31 // pred_region
          %v1042 = vld [vmem:[#allocation2] sm:$0xff]
          %v1043 = vld [vmem:[#allocation2 + $0x8] sm:$0xff]
          %v1044 = vld [vmem:[#allocation2 + $0x10] sm:$0xff]
          %v1045 = vld [vmem:[#allocation2 + $0x18] sm:$0xff]
          %v1046 = vadd.f32 %v1042, %v1014
          %v1047 = vadd.f32 %v1043, %v1016
          %v1048 = vadd.f32 %v1044, %v1018
          %v1049 = vadd.f32 %v1045, %v1020
          %1050 = vst [vmem:[#allocation8] sm:$0xff] %v1046
          %1051 = vst [vmem:[#allocation8 + $0x8] sm:$0xff] %v1047
          %1052 = vst [vmem:[#allocation8 + $0x10] sm:$0xff] %v1048
          %1053 = vst [vmem:[#allocation8 + $0x18] sm:$0xff] %v1049
        $region52: #{feed_forward_packed.1} parent=31 // pred_fallthru
          _
        // Predicated region
        $region53: #{feed_forward_packed.1} parent=31 // pred_check
          %p1054 = pneg %p129
        $region54: #{feed_forward_packed.1} parent=31 // pred_check_branch
          %1056 = sbr.rel (%p1054) target = $region56
        $region55: #{feed_forward_packed.1} parent=31 // pred_region
          %s1057 = smul.u32 2, %s25
          %s1059 = ssub.s32 512, 512
          %1060 = vsyncadd [#allocation5], %s1059
          %s1061 = smul.addr %s1057, 2
          %s1062 = smul.addr %s1061, 128
          %s1063 = scalar_lea.hbm %s3, %s1062
          %s1064 = sshll.u32 [#allocation8], 4
          %s1065 = int_to_ptr.vmem [resolvable:$true] %s1064
          %1070 = dma.vmem_to_hbm [thread:$0]  %s1065, 512, %s1063, [#allocation5], 256, 256, 16
        $region56: #{feed_forward_packed.1} parent=31 // pred_fallthru
          _
        // Predicated region
        $region57: #{feed_forward_packed.1} parent=31 // pred_check
          %p1071 = pneg %p129
        $region58: #{feed_forward_packed.1} parent=31 // pred_check_branch
          %1073 = sbr.rel (%p1071) target = $region60
        $region59: #{feed_forward_packed.1} parent=31 // pred_region
          %1074 = dma.done [#allocation5], 512
        $region60: #{feed_forward_packed.1} parent=31 // pred_fallthru
          _
      $region32: #{feed_forward_packed.1} parent=5 // pred_fallthru
        _
      %p1075 = scmp.le.s32.totalorder 2, %s16
      // Predicated region
      $region61: #{feed_forward_packed.1} parent=5 // pred_check
        %p1076 = pneg %p1075
      $region62: #{feed_forward_packed.1} parent=5 // pred_check_branch
        %1078 = sbr.rel (%p1076) target = $region64
      $region63: #{feed_forward_packed.1} parent=5 // pred_region
        %s1079 = ssub.s32 %s16, 2
      $region64: #{feed_forward_packed.1} parent=5 // pred_fallthru
        _
    $region6: #{feed_forward_packed.1} parent=1 // loop_footer
      %s20 = sadd.s32 1, %s16
    $region7: #{feed_forward_packed.1} parent=1 // loop_footer_branch
      %15 = sbr.rel target = $region3
    $region8: #{feed_forward_packed.1} parent=1 // loop_exit
      _
    %1080 = vsyncpa [#allocation4], 1
    %s1081 = scalar_lea.sflag [#allocation4], 1
    %1082 = vsyncpa %s1081, 1
    %1083 = vsyncpa [#allocation7], 1
    %s1084 = scalar_lea.sflag [#allocation7], 1
    %1085 = vsyncpa %s1084, 1
    %1086 = vsyncpa [#allocation5], 1
    %s1087 = scalar_lea.sflag [#allocation5], 1
    %1088 = vsyncpa %s1087, 1

</llo_original>
